<compile_context>
chip_gen: v5e
topology: v5e:2x2
jax: 0.10.0
libtpu: 0.0.40
codegen_flags: <defaults>
</compile_context>

<pallas_src>
import functools
import math

import jax
import jax.numpy as jnp
from jax.experimental import pallas as pl
from jax.experimental.pallas import tpu as pltpu

_LANE = 128


# ---------------------------------------------------------------------------
# Kernel
# ---------------------------------------------------------------------------
def coupling_kernel(xy_ref, mask_ref,
                    w0_ref, b0_ref, w1_ref, b1_ref, w2_ref, b2_ref,
                    u_ref, logs_ref,
                    act_ref,
                    *, hidden_size, input_size, matmul_dtype):
    H = hidden_size
    D = input_size
    mm = matmul_dtype

    xy = xy_ref[...]                  # (D+C, TB)  batch on lanes, x rows first
    mcol = mask_ref[...]              # (D+C, 1)   coupling mask on x rows, 1.0 on y rows
    x = xy[:D]                        # (D, TB)    unmasked x for the final update
    inv_mask = 1.0 - mcol[:D]         # (D, 1)

    # ---- layer 0: one matmul for both nets and both inputs (K = D+C)
    inp = (xy * mcol).astype(mm)      # masked x rows + pass-through y rows
    z0 = jnp.dot(w0_ref[...], inp, preferred_element_type=jnp.float32) + b0_ref[...]
    act_ref[:H, :] = jnp.tanh(z0[:H])             # s-path activations
    act_ref[H:, :] = jnp.maximum(z0[H:], 0.0)     # t-path activations

    # ---- layer 1: block-diagonal stacked s/t weights -> single matmul
    z1 = jnp.dot(w1_ref[...], act_ref[...].astype(mm),
                 preferred_element_type=jnp.float32) + b1_ref[...]
    act_ref[:H, :] = jnp.tanh(z1[:H])
    act_ref[H:, :] = jnp.maximum(z1[H:], 0.0)

    # ---- layer 2: block-diagonal -> s in rows [:D], t in rows [D:]
    z2 = jnp.dot(w2_ref[...], act_ref[...].astype(mm),
                 preferred_element_type=jnp.float32) + b2_ref[...]
    s = z2[:D]
    t = z2[D:] * inv_mask
    log_s = jnp.tanh(s) * inv_mask                # EUP slot: tanh + exp

    u_ref[...] = x * jnp.exp(log_s) + t
    logs_ref[...] = log_s


# ---------------------------------------------------------------------------
# Tiling / VMEM helpers
# ---------------------------------------------------------------------------
def _vmem_limit_bytes():
    cap = None
    try:
        cap = int(pltpu.get_tpu_info().vmem_capacity_bytes)
    except Exception:
        cap = None
    if not cap or cap <= 0:
        cap = 64 * 1024 * 1024          # conservative floor: v7x has 64 MiB / TC
    # ~3/4 of physical, capped: v7x -> 48 MiB, v5e/v6e -> 96 MiB
    return min((cap * 3) // 4, 96 * 1024 * 1024)


def _pick_tile_b(batch_padded, bytes_per_col, budget_bytes, min_steps=4):
    """Largest lane-dense (multiple-of-128) tile that divides the padded batch,
    fits the VMEM budget, and leaves >= min_steps grid steps so both v7x
    TensorCores each get >= 2 pipelined steps."""
    max_cols = max(budget_bytes // max(bytes_per_col, 1), _LANE)
    candidates = (32768, 16384, 8192, 4096, 2048, 1024, 512, 256, 128)
    for t in candidates:
        if t <= max_cols and batch_padded % t == 0 and batch_padded // t >= min_steps:
            return t
    for t in candidates:                 # small batches: drop the min-steps rule
        if t <= max_cols and batch_padded % t == 0:
            return t
    return _LANE                          # batch_padded is always a lane multiple


def _block_diag(a, b):
    (m, n), (p, q) = a.shape, b.shape
    top = jnp.concatenate([a, jnp.zeros((m, q), a.dtype)], axis=1)
    bot = jnp.concatenate([jnp.zeros((p, n), b.dtype), b], axis=1)
    return jnp.concatenate([top, bot], axis=0)


# ---------------------------------------------------------------------------
# Wrappers
# ---------------------------------------------------------------------------
def linear_masked_coupling_forward_t(x_t, y_t, mask, params, *,
                                     tile_b=None, matmul_dtype=jnp.float32):
    """LinearMaskedCoupling forward in (feature, batch) layout.

    x_t: (D, B), y_t: (C, B), mask: (D,) binary coupling mask.
    params: PyTorch-convention weights (w: (out, in), b: (out,)) for the s/t
            nets, layers 0..2 (keys s_w0/s_b0/.../t_w2/t_b2).
    Returns (u_t, log_s_t), both (D, B). Keeping this batch-last layout across
    adjacent flow layers avoids the HBM round trips of standalone transposes.
    """
    f32 = jnp.float32
    D, B = x_t.shape
    C = y_t.shape[0]
    H = params["s_b0"].shape[-1]
    assert D % 8 == 0 and H % 8 == 0, (
        "D and H must be multiples of 8 for aligned sublane row slices")

    # ---- pad batch to a lane multiple so stores stay unmasked full-lane
    B_pad = ((B + _LANE - 1) // _LANE) * _LANE
    xy = jnp.concatenate([x_t.astype(f32), y_t.astype(f32)], axis=0)     # (D+C, B)
    if B_pad != B:
        xy = jnp.pad(xy, ((0, 0), (0, B_pad - B)))

    # ---- weight packing: fused layer 0, block-diagonal layers 1/2
    def reorder_l0(w):     # PyTorch input is cat([y, mx]); new row order is [x; y]
        return jnp.concatenate([w[:, C:], w[:, :C]], axis=1)

    w0 = jnp.concatenate([reorder_l0(params["s_w0"]),
                          reorder_l0(params["t_w0"])], axis=0)            # (2H, D+C)
    b0 = jnp.concatenate([params["s_b0"], params["t_b0"]], 0).reshape(2 * H, 1)
    w1 = _block_diag(params["s_w1"], params["t_w1"])                      # (2H, 2H)
    b1 = jnp.concatenate([params["s_b1"], params["t_b1"]], 0).reshape(2 * H, 1)
    w2 = _block_diag(params["s_w2"], params["t_w2"])                      # (2D, 2H)
    b2 = jnp.concatenate([params["s_b2"], params["t_b2"]], 0).reshape(2 * D, 1)

    w0 = w0.astype(matmul_dtype)
    w1 = w1.astype(matmul_dtype)
    w2 = w2.astype(matmul_dtype)
    b0, b1, b2 = b0.astype(f32), b1.astype(f32), b2.astype(f32)

    mask_col = jnp.concatenate(
        [mask.reshape(D, 1).astype(f32), jnp.ones((C, 1), f32)], axis=0)  # (D+C, 1)

    # ---- VMEM-budget-aware tile selection
    vmem_limit = _vmem_limit_bytes()
    itemsize = 4
    weight_bytes = 2 * itemsize * (w0.size + w1.size + w2.size
                                   + b0.size + b1.size + b2.size + mask_col.size)
    bytes_per_col = itemsize * (
        2 * (D + C)                     # xy input stream (double-buffered)
        + 2 * 2 * D                     # u / log_s output streams (double-buffered)
        + 2 * H                         # activation scratch (single-buffered)
        + 2 * (2 * H) + 2 * D + (D + C))  # headroom: z0/z1/z2/masked-input temps
    budget = max((vmem_limit * 3) // 4 - weight_bytes, _LANE * bytes_per_col)
    if tile_b is None:
        tile_b = _pick_tile_b(B_pad, bytes_per_col, budget)
    assert B_pad % tile_b == 0 and tile_b % _LANE == 0, (B_pad, tile_b)

    batch_spec = lambda rows: pl.BlockSpec((rows, tile_b), lambda i: (0, i))
    full = lambda shape: pl.BlockSpec(shape, lambda i: (0,) * len(shape))

    kernel = functools.partial(coupling_kernel, hidden_size=H, input_size=D,
                               matmul_dtype=matmul_dtype)

    fn = pl.pallas_call(
        kernel,
        out_shape=(jax.ShapeDtypeStruct((D, B_pad), f32),
                   jax.ShapeDtypeStruct((D, B_pad), f32)),
        grid_spec=pltpu.PrefetchScalarGridSpec(
            num_scalar_prefetch=0,
            grid=(B_pad // tile_b,),
            in_specs=[
                batch_spec(D + C),                         # xy (batch on lanes)
                full((D + C, 1)),                          # mask column
                full((2 * H, D + C)), full((2 * H, 1)),    # fused layer 0
                full((2 * H, 2 * H)), full((2 * H, 1)),    # block-diag layer 1
                full((2 * D, 2 * H)), full((2 * D, 1)),    # block-diag layer 2
            ],
            out_specs=[batch_spec(D), batch_spec(D)],
            scratch_shapes=[pltpu.VMEM((2 * H, tile_b), f32)],
        ),
        compiler_params=pltpu.CompilerParams(
            dimension_semantics=("parallel",),
            vmem_limit_bytes=vmem_limit,
        ),
    )

    u_t, logs_t = fn(xy, mask_col, w0, b0, w1, b1, w2, b2)
    if B_pad != B:
        u_t = u_t[:, :B]
        logs_t = logs_t[:, :B]
    return u_t, logs_t


def linear_masked_coupling_forward(x, y, mask, params, **kwargs):
    """PyTorch-layout convenience wrapper: x (B, D), y (B, C) -> (u, log_s) (B, D).

    The transposes here are standalone XLA ops (extra HBM round trips on large
    batches); callers inside a flow stack should use
    linear_masked_coupling_forward_t and keep the (feature, batch) layout.
    """
    u_t, logs_t = linear_masked_coupling_forward_t(x.T, y.T, mask, params, **kwargs)
    return u_t.T, logs_t.T


# ---------------------------------------------------------------------------
# Synthetic params + pure-JAX reference (matches the PyTorch module)
# ---------------------------------------------------------------------------
def make_params(key, input_size, hidden_size, cond_label_size):
    """Deterministic synthetic weights in PyTorch convention: w (out, in), b (out,).

    In the PyTorch module t_net starts as deepcopy(s_net); the forward must hold
    for arbitrary trained weights, so independent s/t weights are drawn here to
    make the numerical check stronger.
    """
    D, H, C = input_size, hidden_size, cond_label_size
    ks = jax.random.split(key, 6)

    def lin(k, fan_in, fan_out):
        bound = 1.0 / math.sqrt(fan_in)
        kw, kb = jax.random.split(k)
        w = jax.random.uniform(kw, (fan_out, fan_in), jnp.float32, -bound, bound)
        b = jax.random.uniform(kb, (fan_out,), jnp.float32, -bound, bound)
        return w, b

    s_w0, s_b0 = lin(ks[0], C + D, H)   # first Linear sees cat([y, mx])
    s_w1, s_b1 = lin(ks[1], H, H)
    s_w2, s_b2 = lin(ks[2], H, D)
    t_w0, t_b0 = lin(ks[3], C + D, H)
    t_w1, t_b1 = lin(ks[4], H, H)
    t_w2, t_b2 = lin(ks[5], H, D)
    return dict(s_w0=s_w0, s_b0=s_b0, s_w1=s_w1, s_b1=s_b1, s_w2=s_w2, s_b2=s_b2,
                t_w0=t_w0, t_b0=t_b0, t_w1=t_w1, t_b1=t_b1, t_w2=t_w2, t_b2=t_b2)


def reference_forward(x, y, mask_row, p):
    """Pure-JAX reference matching the PyTorch forward (feature-last layout)."""
    mx = x * mask_row
    inp = jnp.concatenate([y, mx], axis=-1)
    h = jnp.tanh(inp @ p["s_w0"].T + p["s_b0"])
    h = jnp.tanh(h @ p["s_w1"].T + p["s_b1"])
    s = h @ p["s_w2"].T + p["s_b2"]
    g = jax.nn.relu(inp @ p["t_w0"].T + p["t_b0"])
    g = jax.nn.relu(g @ p["t_w1"].T + p["t_b1"])
    t = (g @ p["t_w2"].T + p["t_b2"]) * (1.0 - mask_row)
    log_s = jnp.tanh(s) * (1.0 - mask_row)
    u = x * jnp.exp(log_s) + t
    return u, log_s


if __name__ == "__main__":
    # batch, input_size, hidden_size, cond_label_size (n_hidden=1)
    B, D, H, C = 512, 8, 32, 4

    key = jax.random.PRNGKey(0)
    k_x, k_y, k_p = jax.random.split(key, 3)

    x = jax.random.normal(k_x, (B, D), jnp.float32)
    y = jax.random.normal(k_y, (B, C), jnp.float32)
    mask = (jnp.arange(D) % 2).astype(jnp.float32)   # alternating binary coupling mask
    params = make_params(k_p, D, H, C)

    u, log_det = linear_masked_coupling_forward(x, y, mask, params)
    jax.block_until_ready((u, log_det))

    u_ref, log_det_ref = reference_forward(x, y, mask.reshape(1, D), params)
    assert jnp.allclose(u, u_ref, atol=1e-4, rtol=1e-4), float(jnp.abs(u - u_ref).max())
    assert jnp.allclose(log_det, log_det_ref, atol=1e-4, rtol=1e-4), \
        float(jnp.abs(log_det - log_det_ref).max())

    # ragged batch exercises the pad-to-lane-multiple path (no masked stores)
    Br = 300
    u2, ld2 = linear_masked_coupling_forward(x[:Br], y[:Br], mask, params)
    jax.block_until_ready((u2, ld2))
    u2_ref, ld2_ref = reference_forward(x[:Br], y[:Br], mask.reshape(1, D), params)
    assert jnp.allclose(u2, u2_ref, atol=1e-4, rtol=1e-4), \
        float(jnp.abs(u2 - u2_ref).max())
    assert jnp.allclose(ld2, ld2_ref, atol=1e-4, rtol=1e-4), \
        float(jnp.abs(ld2 - ld2_ref).max())

    print("KERNEL_OK")
</pallas_src>

<mosaic_0001>
module attributes {stable_mosaic.version = 11 : i64} {
  func.func @coupling_kernel(%arg0: i32, %arg1: memref<12x128xf32, #tpu.memory_space<vmem>>, %arg2: memref<12x1xf32, #tpu.memory_space<vmem>>, %arg3: memref<64x12xf32, #tpu.memory_space<vmem>>, %arg4: memref<64x1xf32, #tpu.memory_space<vmem>>, %arg5: memref<64x64xf32, #tpu.memory_space<vmem>>, %arg6: memref<64x1xf32, #tpu.memory_space<vmem>>, %arg7: memref<16x64xf32, #tpu.memory_space<vmem>>, %arg8: memref<16x1xf32, #tpu.memory_space<vmem>>, %arg9: memref<8x128xf32, #tpu.memory_space<vmem>>, %arg10: memref<8x128xf32, #tpu.memory_space<vmem>>, %arg11: memref<64x128xf32, #tpu.memory_space<vmem>>) attributes {dimension_semantics = [#tpu.dimension_semantics<parallel>], iteration_bounds = array<i64: 4>, scalar_prefetch = 0 : i64, scratch_operands = 1 : i64, tpu.core_type = #tpu.core_type<tc>, window_params = [{transform_indices = @transform_0, window_bounds = array<i64: 12, 128>}, {pipeline_mode = #tpu.pipeline_mode<synchronous>, transform_indices = @transform_1, window_bounds = array<i64: 12, 1>}, {pipeline_mode = #tpu.pipeline_mode<synchronous>, transform_indices = @transform_2, window_bounds = array<i64: 64, 12>}, {pipeline_mode = #tpu.pipeline_mode<synchronous>, transform_indices = @transform_3, window_bounds = array<i64: 64, 1>}, {pipeline_mode = #tpu.pipeline_mode<synchronous>, transform_indices = @transform_4, window_bounds = array<i64: 64, 64>}, {pipeline_mode = #tpu.pipeline_mode<synchronous>, transform_indices = @transform_5, window_bounds = array<i64: 64, 1>}, {pipeline_mode = #tpu.pipeline_mode<synchronous>, transform_indices = @transform_6, window_bounds = array<i64: 16, 64>}, {pipeline_mode = #tpu.pipeline_mode<synchronous>, transform_indices = @transform_7, window_bounds = array<i64: 16, 1>}, {transform_indices = @transform_8, window_bounds = array<i64: 8, 128>}, {transform_indices = @transform_9, window_bounds = array<i64: 8, 128>}]} {
    %c0 = arith.constant 0 : index
    %c0_0 = arith.constant 0 : index
    %0 = vector.load %arg1[%c0, %c0_0] : memref<12x128xf32, #tpu.memory_space<vmem>>, vector<12x128xf32>
    %c0_1 = arith.constant 0 : index
    %c0_2 = arith.constant 0 : index
    %1 = vector.load %arg2[%c0_1, %c0_2] : memref<12x1xf32, #tpu.memory_space<vmem>>, vector<12x1xf32>
    %2 = vector.extract_strided_slice %0 {offsets = [0, 0], sizes = [8, 128], strides = [1, 1]} : vector<12x128xf32> to vector<8x128xf32>
    %3 = vector.extract_strided_slice %1 {offsets = [0, 0], sizes = [8, 1], strides = [1, 1]} : vector<12x1xf32> to vector<8x1xf32>
    %cst = arith.constant 1.000000e+00 : f32
    %4 = vector.broadcast %cst : f32 to vector<8x1xf32>
    %5 = arith.subf %4, %3 : vector<8x1xf32>
    %6 = vector.broadcast %1 : vector<12x1xf32> to vector<12x128xf32>
    %7 = arith.mulf %0, %6 : vector<12x128xf32>
    %c0_3 = arith.constant 0 : index
    %c0_4 = arith.constant 0 : index
    %8 = vector.load %arg3[%c0_3, %c0_4] : memref<64x12xf32, #tpu.memory_space<vmem>>, vector<64x12xf32>
    %cst_5 = arith.constant dense<0.000000e+00> : vector<64x128xf32>
    %9 = tpu.matmul %8, %7, %cst_5 {dimension_numbers = #tpu.dot_dimension_numbers<[1], [0], [0], [1], [0, 0, 1, 1], [], []>} : vector<64x12xf32>, vector<12x128xf32>, vector<64x128xf32> -> vector<64x128xf32>
    %c0_6 = arith.constant 0 : index
    %c0_7 = arith.constant 0 : index
    %10 = vector.load %arg4[%c0_6, %c0_7] : memref<64x1xf32, #tpu.memory_space<vmem>>, vector<64x1xf32>
    %11 = vector.broadcast %10 : vector<64x1xf32> to vector<64x128xf32>
    %12 = arith.addf %9, %11 : vector<64x128xf32>
    %13 = vector.extract_strided_slice %12 {offsets = [0, 0], sizes = [32, 128], strides = [1, 1]} : vector<64x128xf32> to vector<32x128xf32>
    %14 = math.tanh %13 : vector<32x128xf32>
    %c0_8 = arith.constant 0 : index
    %c0_9 = arith.constant 0 : index
    %15 = vector.load %arg11[%c0_8, %c0_9] : memref<64x128xf32, #tpu.memory_space<vmem>>, vector<32x128xf32>
    tpu.vector_store %arg11[%c0_8, %c0_9], %14 {strides = array<i32>} : memref<64x128xf32, #tpu.memory_space<vmem>>, vector<32x128xf32>,
    %16 = vector.extract_strided_slice %12 {offsets = [32, 0], sizes = [32, 128], strides = [1, 1]} : vector<64x128xf32> to vector<32x128xf32>
    %cst_10 = arith.constant 0.000000e+00 : f32
    %17 = vector.broadcast %cst_10 : f32 to vector<32x128xf32>
    %18 = arith.maximumf %16, %17 : vector<32x128xf32>
    %c32 = arith.constant 32 : index
    %c0_11 = arith.constant 0 : index
    %19 = vector.load %arg11[%c32, %c0_11] : memref<64x128xf32, #tpu.memory_space<vmem>>, vector<32x128xf32>
    tpu.vector_store %arg11[%c32, %c0_11], %18 {strides = array<i32>} : memref<64x128xf32, #tpu.memory_space<vmem>>, vector<32x128xf32>,
    %c0_12 = arith.constant 0 : index
    %c0_13 = arith.constant 0 : index
    %20 = vector.load %arg5[%c0_12, %c0_13] : memref<64x64xf32, #tpu.memory_space<vmem>>, vector<64x64xf32>
    %c0_14 = arith.constant 0 : index
    %c0_15 = arith.constant 0 : index
    %21 = vector.load %arg11[%c0_14, %c0_15] : memref<64x128xf32, #tpu.memory_space<vmem>>, vector<64x128xf32>
    %cst_16 = arith.constant dense<0.000000e+00> : vector<64x128xf32>
    %22 = tpu.matmul %20, %21, %cst_16 {dimension_numbers = #tpu.dot_dimension_numbers<[1], [0], [0], [1], [0, 0, 1, 1], [], []>} : vector<64x64xf32>, vector<64x128xf32>, vector<64x128xf32> -> vector<64x128xf32>
    %c0_17 = arith.constant 0 : index
    %c0_18 = arith.constant 0 : index
    %23 = vector.load %arg6[%c0_17, %c0_18] : memref<64x1xf32, #tpu.memory_space<vmem>>, vector<64x1xf32>
    %24 = vector.broadcast %23 : vector<64x1xf32> to vector<64x128xf32>
    %25 = arith.addf %22, %24 : vector<64x128xf32>
    %26 = vector.extract_strided_slice %25 {offsets = [0, 0], sizes = [32, 128], strides = [1, 1]} : vector<64x128xf32> to vector<32x128xf32>
    %27 = math.tanh %26 : vector<32x128xf32>
    %c0_19 = arith.constant 0 : index
    %c0_20 = arith.constant 0 : index
    %28 = vector.load %arg11[%c0_19, %c0_20] : memref<64x128xf32, #tpu.memory_space<vmem>>, vector<32x128xf32>
    tpu.vector_store %arg11[%c0_19, %c0_20], %27 {strides = array<i32>} : memref<64x128xf32, #tpu.memory_space<vmem>>, vector<32x128xf32>,
    %29 = vector.extract_strided_slice %25 {offsets = [32, 0], sizes = [32, 128], strides = [1, 1]} : vector<64x128xf32> to vector<32x128xf32>
    %cst_21 = arith.constant 0.000000e+00 : f32
    %30 = vector.broadcast %cst_21 : f32 to vector<32x128xf32>
    %31 = arith.maximumf %29, %30 : vector<32x128xf32>
    %c32_22 = arith.constant 32 : index
    %c0_23 = arith.constant 0 : index
    %32 = vector.load %arg11[%c32_22, %c0_23] : memref<64x128xf32, #tpu.memory_space<vmem>>, vector<32x128xf32>
    tpu.vector_store %arg11[%c32_22, %c0_23], %31 {strides = array<i32>} : memref<64x128xf32, #tpu.memory_space<vmem>>, vector<32x128xf32>,
    %c0_24 = arith.constant 0 : index
    %c0_25 = arith.constant 0 : index
    %33 = vector.load %arg7[%c0_24, %c0_25] : memref<16x64xf32, #tpu.memory_space<vmem>>, vector<16x64xf32>
    %c0_26 = arith.constant 0 : index
    %c0_27 = arith.constant 0 : index
    %34 = vector.load %arg11[%c0_26, %c0_27] : memref<64x128xf32, #tpu.memory_space<vmem>>, vector<64x128xf32>
    %cst_28 = arith.constant dense<0.000000e+00> : vector<16x128xf32>
    %35 = tpu.matmul %33, %34, %cst_28 {dimension_numbers = #tpu.dot_dimension_numbers<[1], [0], [0], [1], [0, 0, 1, 1], [], []>} : vector<16x64xf32>, vector<64x128xf32>, vector<16x128xf32> -> vector<16x128xf32>
    %c0_29 = arith.constant 0 : index
    %c0_30 = arith.constant 0 : index
    %36 = vector.load %arg8[%c0_29, %c0_30] : memref<16x1xf32, #tpu.memory_space<vmem>>, vector<16x1xf32>
    %37 = vector.broadcast %36 : vector<16x1xf32> to vector<16x128xf32>
    %38 = arith.addf %35, %37 : vector<16x128xf32>
    %39 = vector.extract_strided_slice %38 {offsets = [0, 0], sizes = [8, 128], strides = [1, 1]} : vector<16x128xf32> to vector<8x128xf32>
    %40 = vector.extract_strided_slice %38 {offsets = [8, 0], sizes = [8, 128], strides = [1, 1]} : vector<16x128xf32> to vector<8x128xf32>
    %41 = vector.broadcast %5 : vector<8x1xf32> to vector<8x128xf32>
    %42 = arith.mulf %40, %41 : vector<8x128xf32>
    %43 = math.tanh %39 : vector<8x128xf32>
    %44 = vector.broadcast %5 : vector<8x1xf32> to vector<8x128xf32>
    %45 = arith.mulf %43, %44 : vector<8x128xf32>
    %46 = math.exp %45 : vector<8x128xf32>
    %47 = arith.mulf %2, %46 : vector<8x128xf32>
    %48 = arith.addf %47, %42 : vector<8x128xf32>
    %c0_31 = arith.constant 0 : index
    %c0_32 = arith.constant 0 : index
    %49 = vector.load %arg9[%c0_31, %c0_32] : memref<8x128xf32, #tpu.memory_space<vmem>>, vector<8x128xf32>
    tpu.vector_store %arg9[%c0_31, %c0_32], %48 {strides = array<i32>} : memref<8x128xf32, #tpu.memory_space<vmem>>, vector<8x128xf32>,
    %c0_33 = arith.constant 0 : index
    %c0_34 = arith.constant 0 : index
    %50 = vector.load %arg10[%c0_33, %c0_34] : memref<8x128xf32, #tpu.memory_space<vmem>>, vector<8x128xf32>
    tpu.vector_store %arg10[%c0_33, %c0_34], %45 {strides = array<i32>} : memref<8x128xf32, #tpu.memory_space<vmem>>, vector<8x128xf32>,
    return
  }
  func.func @transform_0(%arg0: i32) -> (i32, i32) {
    %c0_i32 = arith.constant 0 : i32
    %c0_i32_0 = arith.constant 0 : i32
    return %c0_i32, %arg0 : i32, i32
  }
  func.func @transform_1(%arg0: i32) -> (i32, i32) {
    %c0_i32 = arith.constant 0 : i32
    %c0_i32_0 = arith.constant 0 : i32
    %c0_i32_1 = arith.constant 0 : i32
    return %c0_i32, %c0_i32_0 : i32, i32
  }
  func.func @transform_2(%arg0: i32) -> (i32, i32) {
    %c0_i32 = arith.constant 0 : i32
    %c0_i32_0 = arith.constant 0 : i32
    %c0_i32_1 = arith.constant 0 : i32
    return %c0_i32, %c0_i32_0 : i32, i32
  }
  func.func @transform_3(%arg0: i32) -> (i32, i32) {
    %c0_i32 = arith.constant 0 : i32
    %c0_i32_0 = arith.constant 0 : i32
    %c0_i32_1 = arith.constant 0 : i32
    return %c0_i32, %c0_i32_0 : i32, i32
  }
  func.func @transform_4(%arg0: i32) -> (i32, i32) {
    %c0_i32 = arith.constant 0 : i32
    %c0_i32_0 = arith.constant 0 : i32
    %c0_i32_1 = arith.constant 0 : i32
    return %c0_i32, %c0_i32_0 : i32, i32
  }
  func.func @transform_5(%arg0: i32) -> (i32, i32) {
    %c0_i32 = arith.constant 0 : i32
    %c0_i32_0 = arith.constant 0 : i32
    %c0_i32_1 = arith.constant 0 : i32
    return %c0_i32, %c0_i32_0 : i32, i32
  }
  func.func @transform_6(%arg0: i32) -> (i32, i32) {
    %c0_i32 = arith.constant 0 : i32
    %c0_i32_0 = arith.constant 0 : i32
    %c0_i32_1 = arith.constant 0 : i32
    return %c0_i32, %c0_i32_0 : i32, i32
  }
  func.func @transform_7(%arg0: i32) -> (i32, i32) {
    %c0_i32 = arith.constant 0 : i32
    %c0_i32_0 = arith.constant 0 : i32
    %c0_i32_1 = arith.constant 0 : i32
    return %c0_i32, %c0_i32_0 : i32, i32
  }
  func.func @transform_8(%arg0: i32) -> (i32, i32) {
    %c0_i32 = arith.constant 0 : i32
    %c0_i32_0 = arith.constant 0 : i32
    return %c0_i32, %arg0 : i32, i32
  }
  func.func @transform_9(%arg0: i32) -> (i32, i32) {
    %c0_i32 = arith.constant 0 : i32
    %c0_i32_0 = arith.constant 0 : i32
    return %c0_i32, %arg0 : i32, i32
  }
}

</mosaic_0001>

<llo_original>
// kernel: tpu_custom_call.1
$region0: #{tpu_custom_call.1}
  #allocation0 [shape = 'u32[]', space=smem, size = 0x4, offset = 0x4, fixed_abs, tag = 'smem constant byte address 0x4 - core index']
  #allocation1 [shape = 'u32[72,128]{1,0:T(1,128)}', space=vmem, size = 0x9000, scoped, tag = 'internal scratch']
  #allocation2 [shape = 'f32[64,128]{1,0:T(8,128)}', space=vmem, size = 0x8000, scoped, tag = 'scratch operand']
  %s0 = inlined_call_operand.vmem [shape: f32[12,512], index: 0, kind: input, shape index: {}]
  %s1 = inlined_call_operand.vmem [shape: f32[12,1], index: 1, kind: input, shape index: {}]
  %s2 = inlined_call_operand.vmem [shape: f32[64,12], index: 2, kind: input, shape index: {}]
  %s3 = inlined_call_operand.vmem [shape: f32[64,1], index: 3, kind: input, shape index: {}]
  %s4 = inlined_call_operand.vmem [shape: f32[64,64], index: 4, kind: input, shape index: {}]
  %s5 = inlined_call_operand.vmem [shape: f32[64,1], index: 5, kind: input, shape index: {}]
  %s6 = inlined_call_operand.vmem [shape: f32[16,64], index: 6, kind: input, shape index: {}]
  %s7 = inlined_call_operand.vmem [shape: f32[16,1], index: 7, kind: input, shape index: {}]
  %s8 = inlined_call_operand.hbm [shape: f32[8,512], index: 8, kind: output, shape index: {0}]
  %s9 = inlined_call_operand.hbm [shape: f32[8,512], index: 9, kind: output, shape index: {1}]
  %10 = xla_tuple %s8, %s9
  %s11 = sld [smem:[#allocation0]]
  $region111: #{tpu_custom_call.1} parent=0
    _
  %s13 = ssub.s32 1, %s11
  %s14 = scalar_select 0, %s13, %s11
  $region1: #{tpu_custom_call.1} parent=0
    #allocation3 [shape = 'u8[16384]{0}', space=vmem, size = 0x4000, scoped, tag = 'input window, operand 0']
    #allocation4 [shape = 'u8[8192]{0}', space=vmem, size = 0x2000, scoped, tag = 'output window, operand 0']
    #allocation5 [shape = 's32[2]{0}', space=sflag, size = 0x8, scoped, tag = 'scoped memory for tpu_custom_call.1']
    #allocation6 [shape = 'u8[8192]{0}', space=vmem, size = 0x2000, scoped, tag = 'output window, operand 1']
    #allocation7 [shape = 's32[2]{0}', space=sflag, size = 0x8, scoped, tag = 'scoped memory for tpu_custom_call.1']
    %15 = vsyncpa [#allocation5], 0
    %s16 = scalar_lea.sflag [#allocation5], 1
    %17 = vsyncpa %s16, 0
    %18 = vsyncpa [#allocation7], 0
    %s19 = scalar_lea.sflag [#allocation7], 1
    %20 = vsyncpa %s19, 0
    loop: start=0, step=1, limit=6
    $region2: #{tpu_custom_call.1} parent=1 // loop_pre_header
      _
    $region3: #{tpu_custom_call.1} parent=1 // loop_header
      %s22 = sphi 0, %s26
      %p23 = scmp.ge.s32.totalorder %s22, 6
      %s32 = sphi 0, %s34
      %s35 = sphi 0, %s32
      %s36 = sphi 0, %s35
      %s52 = sphi 0, %s36
      %s56 = sphi 0, %s56
      %s58 = sphi 0, %s56
      %s59 = sphi 0, %s58
      %s73 = sphi 0, %s59
      %s77 = sphi 0, %s77
      %s79 = sphi 0, %s77
      %s80 = sphi 0, %s79
      %s94 = sphi 0, %s80
      %s98 = sphi 0, %s98
      %s100 = sphi 0, %s98
      %s101 = sphi 0, %s100
      %s115 = sphi 0, %s101
      %s119 = sphi 0, %s119
      %s121 = sphi 0, %s119
      %s122 = sphi 0, %s121
      %s136 = sphi 0, %s122
      %s140 = sphi 0, %s140
      %s142 = sphi 0, %s140
      %s143 = sphi 0, %s142
      %s157 = sphi 0, %s143
      %s161 = sphi 0, %s161
      %s163 = sphi 0, %s161
      %s164 = sphi 0, %s163
      %s178 = sphi 0, %s164
      %s182 = sphi 0, %s182
      %s184 = sphi 0, %s182
      %s185 = sphi 0, %s184
      %s199 = sphi 0, %s185
      %s205 = sphi 0, %s207
      %s208 = sphi 0, %s205
      %s209 = sphi 0, %s208
      %s225 = sphi 0, %s209
      %s231 = sphi 0, %s233
      %s234 = sphi 0, %s231
      %s235 = sphi 0, %s234
      %s251 = sphi 0, %s235
    $region4: #{tpu_custom_call.1} parent=1 // loop_header_branch
      %25 = sbr.rel (%p23) target = $region8
    $region5: #{tpu_custom_call.1} parent=1 // loop_body
      %s27 = ssub.s32 %s22, 1
      %s28 = ssub.s32 %s22, 2
      %s29 = sadd.s32 %s22, 1
      %s30 = ssub.s32 %s22, %s29
      %p31 = scmp.eq.s32.totalorder %s30, 0
      %s33 = sadd.s32 %s32, 1
      %s34 = scalar_select %p31, %s32, %s33
      %p37 = pneg %p31
      %p38 = scmp.eq.s32.totalorder %s22, 3
      %p39 = por %p37, %p38
      %p40 = scmp.ne.s32.totalorder %s32, %s35
      %p41 = scmp.eq.s32.totalorder %s22, 0
      %p42 = por %p40, %p41
      %p43 = scmp.ne.s32.totalorder %s32, %s35
      %p44 = scmp.eq.s32.totalorder %s27, 3
      %p45 = por %p43, %p44
      %p46 = scmp.ne.s32.totalorder %s35, %s36
      %p47 = scmp.eq.s32.totalorder %s27, 0
      %p48 = por %p46, %p47
      %p49 = scmp.ne.s32.totalorder %s35, %s36
      %p50 = scmp.eq.s32.totalorder %s28, 3
      %p51 = por %p49, %p50
      %p53 = scmp.ne.s32.totalorder %s36, %s52
      %p54 = scmp.eq.s32.totalorder %s28, 0
      %p55 = por %p53, %p54
      %s57 = sadd.s32 %s56, 1
      %p60 = scmp.eq.s32.totalorder %s22, 3
      %p61 = scmp.ne.s32.totalorder %s56, %s58
      %p62 = scmp.eq.s32.totalorder %s22, 0
      %p63 = por %p61, %p62
      %p64 = scmp.ne.s32.totalorder %s56, %s58
      %p65 = scmp.eq.s32.totalorder %s27, 3
      %p66 = por %p64, %p65
      %p67 = scmp.ne.s32.totalorder %s58, %s59
      %p68 = scmp.eq.s32.totalorder %s27, 0
      %p69 = por %p67, %p68
      %p70 = scmp.ne.s32.totalorder %s58, %s59
      %p71 = scmp.eq.s32.totalorder %s28, 3
      %p72 = por %p70, %p71
      %p74 = scmp.ne.s32.totalorder %s59, %s73
      %p75 = scmp.eq.s32.totalorder %s28, 0
      %p76 = por %p74, %p75
      %s78 = sadd.s32 %s77, 1
      %p81 = scmp.eq.s32.totalorder %s22, 3
      %p82 = scmp.ne.s32.totalorder %s77, %s79
      %p83 = scmp.eq.s32.totalorder %s22, 0
      %p84 = por %p82, %p83
      %p85 = scmp.ne.s32.totalorder %s77, %s79
      %p86 = scmp.eq.s32.totalorder %s27, 3
      %p87 = por %p85, %p86
      %p88 = scmp.ne.s32.totalorder %s79, %s80
      %p89 = scmp.eq.s32.totalorder %s27, 0
      %p90 = por %p88, %p89
      %p91 = scmp.ne.s32.totalorder %s79, %s80
      %p92 = scmp.eq.s32.totalorder %s28, 3
      %p93 = por %p91, %p92
      %p95 = scmp.ne.s32.totalorder %s80, %s94
      %p96 = scmp.eq.s32.totalorder %s28, 0
      %p97 = por %p95, %p96
      %s99 = sadd.s32 %s98, 1
      %p102 = scmp.eq.s32.totalorder %s22, 3
      %p103 = scmp.ne.s32.totalorder %s98, %s100
      %p104 = scmp.eq.s32.totalorder %s22, 0
      %p105 = por %p103, %p104
      %p106 = scmp.ne.s32.totalorder %s98, %s100
      %p107 = scmp.eq.s32.totalorder %s27, 3
      %p108 = por %p106, %p107
      %p109 = scmp.ne.s32.totalorder %s100, %s101
      %p110 = scmp.eq.s32.totalorder %s27, 0
      %p111 = por %p109, %p110
      %p112 = scmp.ne.s32.totalorder %s100, %s101
      %p113 = scmp.eq.s32.totalorder %s28, 3
      %p114 = por %p112, %p113
      %p116 = scmp.ne.s32.totalorder %s101, %s115
      %p117 = scmp.eq.s32.totalorder %s28, 0
      %p118 = por %p116, %p117
      %s120 = sadd.s32 %s119, 1
      %p123 = scmp.eq.s32.totalorder %s22, 3
      %p124 = scmp.ne.s32.totalorder %s119, %s121
      %p125 = scmp.eq.s32.totalorder %s22, 0
      %p126 = por %p124, %p125
      %p127 = scmp.ne.s32.totalorder %s119, %s121
      %p128 = scmp.eq.s32.totalorder %s27, 3
      %p129 = por %p127, %p128
      %p130 = scmp.ne.s32.totalorder %s121, %s122
      %p131 = scmp.eq.s32.totalorder %s27, 0
      %p132 = por %p130, %p131
      %p133 = scmp.ne.s32.totalorder %s121, %s122
      %p134 = scmp.eq.s32.totalorder %s28, 3
      %p135 = por %p133, %p134
      %p137 = scmp.ne.s32.totalorder %s122, %s136
      %p138 = scmp.eq.s32.totalorder %s28, 0
      %p139 = por %p137, %p138
      %s141 = sadd.s32 %s140, 1
      %p144 = scmp.eq.s32.totalorder %s22, 3
      %p145 = scmp.ne.s32.totalorder %s140, %s142
      %p146 = scmp.eq.s32.totalorder %s22, 0
      %p147 = por %p145, %p146
      %p148 = scmp.ne.s32.totalorder %s140, %s142
      %p149 = scmp.eq.s32.totalorder %s27, 3
      %p150 = por %p148, %p149
      %p151 = scmp.ne.s32.totalorder %s142, %s143
      %p152 = scmp.eq.s32.totalorder %s27, 0
      %p153 = por %p151, %p152
      %p154 = scmp.ne.s32.totalorder %s142, %s143
      %p155 = scmp.eq.s32.totalorder %s28, 3
      %p156 = por %p154, %p155
      %p158 = scmp.ne.s32.totalorder %s143, %s157
      %p159 = scmp.eq.s32.totalorder %s28, 0
      %p160 = por %p158, %p159
      %s162 = sadd.s32 %s161, 1
      %p165 = scmp.eq.s32.totalorder %s22, 3
      %p166 = scmp.ne.s32.totalorder %s161, %s163
      %p167 = scmp.eq.s32.totalorder %s22, 0
      %p168 = por %p166, %p167
      %p169 = scmp.ne.s32.totalorder %s161, %s163
      %p170 = scmp.eq.s32.totalorder %s27, 3
      %p171 = por %p169, %p170
      %p172 = scmp.ne.s32.totalorder %s163, %s164
      %p173 = scmp.eq.s32.totalorder %s27, 0
      %p174 = por %p172, %p173
      %p175 = scmp.ne.s32.totalorder %s163, %s164
      %p176 = scmp.eq.s32.totalorder %s28, 3
      %p177 = por %p175, %p176
      %p179 = scmp.ne.s32.totalorder %s164, %s178
      %p180 = scmp.eq.s32.totalorder %s28, 0
      %p181 = por %p179, %p180
      %s183 = sadd.s32 %s182, 1
      %p186 = scmp.eq.s32.totalorder %s22, 3
      %p187 = scmp.ne.s32.totalorder %s182, %s184
      %p188 = scmp.eq.s32.totalorder %s22, 0
      %p189 = por %p187, %p188
      %p190 = scmp.ne.s32.totalorder %s182, %s184
      %p191 = scmp.eq.s32.totalorder %s27, 3
      %p192 = por %p190, %p191
      %p193 = scmp.ne.s32.totalorder %s184, %s185
      %p194 = scmp.eq.s32.totalorder %s27, 0
      %p195 = por %p193, %p194
      %p196 = scmp.ne.s32.totalorder %s184, %s185
      %p197 = scmp.eq.s32.totalorder %s28, 3
      %p198 = por %p196, %p197
      %p200 = scmp.ne.s32.totalorder %s185, %s199
      %p201 = scmp.eq.s32.totalorder %s28, 0
      %p202 = por %p200, %p201
      %s203 = ssub.s32 %s22, %s29
      %p204 = scmp.eq.s32.totalorder %s203, 0
      %s206 = sadd.s32 %s205, 1
      %s207 = scalar_select %p204, %s205, %s206
      %p210 = pneg %p204
      %p211 = scmp.eq.s32.totalorder %s22, 3
      %p212 = por %p210, %p211
      %p213 = scmp.ne.s32.totalorder %s205, %s208
      %p214 = scmp.eq.s32.totalorder %s22, 0
      %p215 = por %p213, %p214
      %p216 = scmp.ne.s32.totalorder %s205, %s208
      %p217 = scmp.eq.s32.totalorder %s27, 3
      %p218 = por %p216, %p217
      %p219 = scmp.ne.s32.totalorder %s208, %s209
      %p220 = scmp.eq.s32.totalorder %s27, 0
      %p221 = por %p219, %p220
      %p222 = scmp.ne.s32.totalorder %s208, %s209
      %p223 = scmp.eq.s32.totalorder %s28, 3
      %p224 = por %p222, %p223
      %p226 = scmp.ne.s32.totalorder %s209, %s225
      %p227 = scmp.eq.s32.totalorder %s28, 0
      %p228 = por %p226, %p227
      %s229 = ssub.s32 %s22, %s29
      %p230 = scmp.eq.s32.totalorder %s229, 0
      %s232 = sadd.s32 %s231, 1
      %s233 = scalar_select %p230, %s231, %s232
      %p236 = pneg %p230
      %p237 = scmp.eq.s32.totalorder %s22, 3
      %p238 = por %p236, %p237
      %p239 = scmp.ne.s32.totalorder %s231, %s234
      %p240 = scmp.eq.s32.totalorder %s22, 0
      %p241 = por %p239, %p240
      %p242 = scmp.ne.s32.totalorder %s231, %s234
      %p243 = scmp.eq.s32.totalorder %s27, 3
      %p244 = por %p242, %p243
      %p245 = scmp.ne.s32.totalorder %s234, %s235
      %p246 = scmp.eq.s32.totalorder %s27, 0
      %p247 = por %p245, %p246
      %p248 = scmp.ne.s32.totalorder %s234, %s235
      %p249 = scmp.eq.s32.totalorder %s28, 3
      %p250 = por %p248, %p249
      %p252 = scmp.ne.s32.totalorder %s235, %s251
      %p253 = scmp.eq.s32.totalorder %s28, 0
      %p254 = por %p252, %p253
      %p255 = scmp.le.s32.totalorder 1, %s22
      %p256 = scmp.lt.s32.totalorder %s22, 5
      %p257 = pnand %p255, %p256
      %p258 = pneg %p257
      // Predicated region
      $region9: #{tpu_custom_call.1} parent=5 // pred_check
        _
      $region10: #{tpu_custom_call.1} parent=5 // pred_check_branch
        %260 = sbr.rel (%p257) target = $region12
      $region11: #{tpu_custom_call.1} parent=5 // pred_region
        %s261 = ssub.s32 %s22, 1
        // Predicated region
        $region13: #{tpu_custom_call.1} parent=11 // pred_check
          %p262 = pneg %p69
        $region14: #{tpu_custom_call.1} parent=11 // pred_check_branch
          %264 = sbr.rel (%p262) target = $region16
        $region15: #{tpu_custom_call.1} parent=11 // pred_region
          _
        $region16: #{tpu_custom_call.1} parent=11 // pred_fallthru
          _
        // Predicated region
        $region17: #{tpu_custom_call.1} parent=11 // pred_check
          %p265 = pneg %p90
        $region18: #{tpu_custom_call.1} parent=11 // pred_check_branch
          %267 = sbr.rel (%p265) target = $region20
        $region19: #{tpu_custom_call.1} parent=11 // pred_region
          _
        $region20: #{tpu_custom_call.1} parent=11 // pred_fallthru
          _
        // Predicated region
        $region21: #{tpu_custom_call.1} parent=11 // pred_check
          %p268 = pneg %p111
        $region22: #{tpu_custom_call.1} parent=11 // pred_check_branch
          %270 = sbr.rel (%p268) target = $region24
        $region23: #{tpu_custom_call.1} parent=11 // pred_region
          _
        $region24: #{tpu_custom_call.1} parent=11 // pred_fallthru
          _
        // Predicated region
        $region25: #{tpu_custom_call.1} parent=11 // pred_check
          %p271 = pneg %p132
        $region26: #{tpu_custom_call.1} parent=11 // pred_check_branch
          %273 = sbr.rel (%p271) target = $region28
        $region27: #{tpu_custom_call.1} parent=11 // pred_region
          _
        $region28: #{tpu_custom_call.1} parent=11 // pred_fallthru
          _
        // Predicated region
        $region29: #{tpu_custom_call.1} parent=11 // pred_check
          %p274 = pneg %p153
        $region30: #{tpu_custom_call.1} parent=11 // pred_check_branch
          %276 = sbr.rel (%p274) target = $region32
        $region31: #{tpu_custom_call.1} parent=11 // pred_region
          _
        $region32: #{tpu_custom_call.1} parent=11 // pred_fallthru
          _
        // Predicated region
        $region33: #{tpu_custom_call.1} parent=11 // pred_check
          %p277 = pneg %p174
        $region34: #{tpu_custom_call.1} parent=11 // pred_check_branch
          %279 = sbr.rel (%p277) target = $region36
        $region35: #{tpu_custom_call.1} parent=11 // pred_region
          _
        $region36: #{tpu_custom_call.1} parent=11 // pred_fallthru
          _
        // Predicated region
        $region37: #{tpu_custom_call.1} parent=11 // pred_check
          %p280 = pneg %p195
        $region38: #{tpu_custom_call.1} parent=11 // pred_check_branch
          %282 = sbr.rel (%p280) target = $region40
        $region39: #{tpu_custom_call.1} parent=11 // pred_region
          _
        $region40: #{tpu_custom_call.1} parent=11 // pred_fallthru
          _
      $region12: #{tpu_custom_call.1} parent=5 // pred_fallthru
        _
      %p283 = scmp.lt.s32.totalorder %s22, 4
      // Predicated region
      $region41: #{tpu_custom_call.1} parent=5 // pred_check
        %p284 = pneg %p283
      $region42: #{tpu_custom_call.1} parent=5 // pred_check_branch
        %286 = sbr.rel (%p284) target = $region44
      $region43: #{tpu_custom_call.1} parent=5 // pred_region
        // Predicated region
        $region45: #{tpu_custom_call.1} parent=43 // pred_check
          %p287 = pneg %p42
        $region46: #{tpu_custom_call.1} parent=43 // pred_check_branch
          %289 = sbr.rel (%p287) target = $region48
        $region47: #{tpu_custom_call.1} parent=43 // pred_region
          %s290 = sand.u32 %s32, 1
          %s291 = sand.u32 %s32, 1
          %s292 = smul.addr %s291, 16
          %s293 = scalar_lea.vmem [#allocation3], %s292
          %s294 = smul.addr %s22, 8
          %s295 = scalar_lea.vmem %s0, %s294
          // Predicated region
          $region49: #{tpu_custom_call.1} parent=47 // pred_check
            _
          $region50: #{tpu_custom_call.1} parent=47 // pred_check_branch
            %297 = sbr.rel (0) target = $region52
          $region51: #{tpu_custom_call.1} parent=47 // pred_region
            // Predicated region
            $region53: #{tpu_custom_call.1} parent=51 // pred_check
              _
            $region54: #{tpu_custom_call.1} parent=51 // pred_check_branch
              %299 = sbr.rel (0) target = $region56
            $region55: #{tpu_custom_call.1} parent=51 // pred_region
              // Predicated region
              $region68: #{tpu_custom_call.1} parent=55 // pred_check
                _
              $region69: #{tpu_custom_call.1} parent=55 // pred_check_branch
                %317 = sbr.rel (0) target = $region71
              $region70: #{tpu_custom_call.1} parent=55 // pred_region
                loop: start=0, step=1, limit=1
                $region72: #{tpu_custom_call.1} parent=70 // loop_pre_header
                  _
                $region73: #{tpu_custom_call.1} parent=70 // loop_header
                  %s319 = sphi 0, %s323
                  %p320 = scmp.ge.s32.totalorder %s319, 1
                  %s324 = sphi %s295, %s295
                  %s325 = sphi %s293, %s293
                $region74: #{tpu_custom_call.1} parent=70 // loop_header_branch
                  %322 = sbr.rel (%p320) target = $region78
                $region75: #{tpu_custom_call.1} parent=70 // loop_body
                  %v326 = vld [vmem:[%s324] sm:$0xff]
                  %327 = vst [vmem:[%s325] sm:$0xff] %v326
                  %v328 = vld [vmem:[%s324 + $0x20] sm:$0xff]
                  %329 = vst [vmem:[%s325 + $0x8] sm:$0xff] %v328
                $region76: #{tpu_custom_call.1} parent=70 // loop_footer
                  %s323 = sadd.s32 1, %s319
                $region77: #{tpu_custom_call.1} parent=70 // loop_footer_branch
                  %318 = sbr.rel target = $region73
                $region78: #{tpu_custom_call.1} parent=70 // loop_exit
                  _
              $region71: #{tpu_custom_call.1} parent=55 // pred_fallthru
                _
              // Predicated region
              $region79: #{tpu_custom_call.1} parent=55 // pred_check
                _
              $region80: #{tpu_custom_call.1} parent=55 // pred_check_branch
                %331 = sbr.rel target = $region82
              $region81: #{tpu_custom_call.1} parent=55 // pred_region
                _
              $region82: #{tpu_custom_call.1} parent=55 // pred_fallthru
                _
            $region56: #{tpu_custom_call.1} parent=51 // pred_fallthru
              _
            // Predicated region
            $region57: #{tpu_custom_call.1} parent=51 // pred_check
              _
            $region58: #{tpu_custom_call.1} parent=51 // pred_check_branch
              %301 = sbr.rel target = $region60
            $region59: #{tpu_custom_call.1} parent=51 // pred_region
              %s303 = ssub.s32 256, 1
              loop: start=0, step=1, limit=1
              $region61: #{tpu_custom_call.1} parent=59 // loop_pre_header
                _
              $region62: #{tpu_custom_call.1} parent=59 // loop_header
                %s305 = sphi 0, %s309
                %p306 = scmp.ge.s32.totalorder %s305, 1
                %s310 = sphi %s295, %s295
                %s311 = sphi %s293, %s293
              $region63: #{tpu_custom_call.1} parent=59 // loop_header_branch
                %308 = sbr.rel (%p306) target = $region67
              $region64: #{tpu_custom_call.1} parent=59 // loop_body
                %v312 = vld [vmem:[%s310] sm:%s303]
                %313 = vst [vmem:[%s311] sm:%s303] %v312
                %v314 = vld [vmem:[%s310 + $0x20] sm:%s303]
                %315 = vst [vmem:[%s311 + $0x8] sm:%s303] %v314
              $region65: #{tpu_custom_call.1} parent=59 // loop_footer
                %s309 = sadd.s32 1, %s305
              $region66: #{tpu_custom_call.1} parent=59 // loop_footer_branch
                %304 = sbr.rel target = $region62
              $region67: #{tpu_custom_call.1} parent=59 // loop_exit
                _
            $region60: #{tpu_custom_call.1} parent=51 // pred_fallthru
              _
          $region52: #{tpu_custom_call.1} parent=47 // pred_fallthru
            _
          %332 = vnop
        $region48: #{tpu_custom_call.1} parent=43 // pred_fallthru
          _
      $region44: #{tpu_custom_call.1} parent=5 // pred_fallthru
        _
      %p333 = scmp.le.s32.totalorder 1, %s22
      %p334 = scmp.lt.s32.totalorder %s22, 5
      %p335 = pnand %p333, %p334
      %p336 = pneg %p335
      // Predicated region
      $region83: #{tpu_custom_call.1} parent=5 // pred_check
        _
      $region84: #{tpu_custom_call.1} parent=5 // pred_check_branch
        %338 = sbr.rel (%p335) target = $region86
      $region85: #{tpu_custom_call.1} parent=5 // pred_region
        %s339 = ssub.s32 %s22, 1
        %s340 = sand.u32 %s35, 1
        %s341 = sand.u32 %s35, 1
        %s342 = smul.addr %s341, 16
        %s343 = scalar_lea.vmem [#allocation3], %s342
        // Predicated region
        $region87: #{tpu_custom_call.1} parent=85 // pred_check
          %p344 = pneg %p48
        $region88: #{tpu_custom_call.1} parent=85 // pred_check_branch
          %346 = sbr.rel (%p344) target = $region90
        $region89: #{tpu_custom_call.1} parent=85 // pred_region
          _
        $region90: #{tpu_custom_call.1} parent=85 // pred_fallthru
          _
        %s347 = sand.u32 %s35, 1
        %s348 = sand.u32 %s35, 1
        %s349 = smul.addr %s348, 16
        %s350 = scalar_lea.vmem [#allocation3], %s349
        %p351 = pneg %p48
        %p352 = pneg %p45
        %p353 = pneg %p69
        %p354 = pneg %p66
        %p355 = pneg %p90
        %p356 = pneg %p87
        %p357 = pneg %p111
        %p358 = pneg %p108
        %p359 = pneg %p132
        %p360 = pneg %p129
        %p361 = pneg %p153
        %p362 = pneg %p150
        %p363 = pneg %p174
        %p364 = pneg %p171
        %p365 = pneg %p195
        %p366 = pneg %p192
        %p367 = pneg %p221
        %p368 = pneg %p218
        %s369 = sand.u32 %s208, 1
        %s370 = scalar_lea.sflag [#allocation5], %s369
        %s371 = sand.u32 %s208, 1
        %s372 = smul.addr %s371, 8
        %s373 = scalar_lea.vmem [#allocation4], %s372
        %p374 = pneg %p247
        %p375 = pneg %p244
        %s376 = sand.u32 %s234, 1
        %s377 = scalar_lea.sflag [#allocation7], %s376
        %s378 = sand.u32 %s234, 1
        %s379 = smul.addr %s378, 8
        %s380 = scalar_lea.vmem [#allocation6], %s379
        %v381 = vld [vmem:[%s343] sm:$0xff]
        %v382 = vld [vmem:[%s343 + $0x8] sm:$0xf]
        %v383 = vld [vmem:[%s1] sm:$0xff]
        %v384 = vld [vmem:[%s1 + $0x8] sm:$0xf]
        %v385 = vsub.f32 1.0, %v383
        %387 = vset.pattern.permute.xlu0 0
        %388 = vperm.xlu0 %387, %v383
        %v389 = vpop.permute.xlu0 %388
        %392 = vset.pattern.permute.xlu0 0
        %393 = vperm.xlu0 %392, %v384
        %v394 = vpop.permute.xlu0 %393
        %v396 = vmul.f32 %v381, %v389
        %v397 = vmul.f32 %v382, %v394
        %v398 = vld [vmem:[%s2] sm:$0xff]
        %v399 = vld [vmem:[%s2 + $0x8] sm:$0xff]
        %v400 = vld [vmem:[%s2 + $0x10] sm:$0xff]
        %v401 = vld [vmem:[%s2 + $0x18] sm:$0xff]
        %v402 = vld [vmem:[%s2 + $0x20] sm:$0xff]
        %v403 = vld [vmem:[%s2 + $0x28] sm:$0xff]
        %v404 = vld [vmem:[%s2 + $0x30] sm:$0xff]
        %v405 = vld [vmem:[%s2 + $0x38] sm:$0xff]
        %v406 = vld [vmem:[%s3] sm:$0xff]
        %v407 = vld [vmem:[%s3 + $0x8] sm:$0xff]
        %v408 = vld [vmem:[%s3 + $0x10] sm:$0xff]
        %v409 = vld [vmem:[%s3 + $0x18] sm:$0xff]
        %v410 = vld [vmem:[%s3 + $0x20] sm:$0xff]
        %v411 = vld [vmem:[%s3 + $0x28] sm:$0xff]
        %v412 = vld [vmem:[%s3 + $0x30] sm:$0xff]
        %v413 = vld [vmem:[%s3 + $0x38] sm:$0xff]
        %415 = vset.pattern.permute.xlu0 0
        %416 = vperm.xlu0 %415, %v406
        %v417 = vpop.permute.xlu0 %416
        %420 = vset.pattern.permute.xlu0 0
        %421 = vperm.xlu0 %420, %v407
        %v422 = vpop.permute.xlu0 %421
        %425 = vset.pattern.permute.xlu0 0
        %426 = vperm.xlu0 %425, %v408
        %v427 = vpop.permute.xlu0 %426
        %430 = vset.pattern.permute.xlu0 0
        %431 = vperm.xlu0 %430, %v409
        %v432 = vpop.permute.xlu0 %431
        %435 = vset.pattern.permute.xlu0 0
        %436 = vperm.xlu0 %435, %v410
        %v437 = vpop.permute.xlu0 %436
        %440 = vset.pattern.permute.xlu0 0
        %441 = vperm.xlu0 %440, %v411
        %v442 = vpop.permute.xlu0 %441
        %445 = vset.pattern.permute.xlu0 0
        %446 = vperm.xlu0 %445, %v412
        %v447 = vpop.permute.xlu0 %446
        %450 = vset.pattern.permute.xlu0 0
        %451 = vperm.xlu0 %450, %v413
        %v452 = vpop.permute.xlu0 %451
        %vm454 = vcmask 97280
        %v456 = vsel %vm454, %v398, 0
        %v459 = vsel %vm454, %v399, 0
        %v462 = vsel %vm454, %v400, 0
        %v465 = vsel %vm454, %v401, 0
        %v468 = vsel %vm454, %v402, 0
        %v471 = vsel %vm454, %v403, 0
        %v474 = vsel %vm454, %v404, 0
        %v477 = vsel %vm454, %v405, 0
        %vm479 = vcmask 1043456
        %v481 = vsel %vm479, %v397, 0
        %483 = vmatpush.msra.mxu0 0.0
        %484 = vmatpush.msra.mxu0 0.0
        %485 = vmatpush.msra.mxu0 0.0
        %486 = vmatpush.msra.mxu0 0.0
        %487 = vmatpush.msra.mxu0 0.0
        %488 = vmatpush.msra.mxu0 0.0
        %489 = vmatpush.msra.mxu0 0.0
        %490 = vmatpush.msra.mxu0 0.0
        %491 = vmatpush.msra.mxu0 0.0
        %492 = vmatpush.msra.mxu0 0.0
        %493 = vmatpush.msra.mxu0 0.0
        %494 = vmatpush.msra.mxu0 0.0
        %495 = vmatpush.msra.mxu0 0.0
        %496 = vmatpush.msra.mxu0 0.0
        %497 = vmatpush.msra.mxu0 %v481
        %498 = vmatpush.msra.mxu0 %v396
        %499 = vmatmul.f32.gmra.mxu0 %v456
        %v500 = vpop.f32.mrf.mxu0
        %v501 = vadd.f32 %v417, %v500
        %502 = vmatmul.f32.gmra.mxu0 %v459
        %v503 = vpop.f32.mrf.mxu0
        %v504 = vadd.f32 %v422, %v503
        %505 = vmatmul.f32.gmra.mxu0 %v462
        %v506 = vpop.f32.mrf.mxu0
        %v507 = vadd.f32 %v427, %v506
        %508 = vmatmul.f32.gmra.mxu0 %v465
        %v509 = vpop.f32.mrf.mxu0
        %v510 = vadd.f32 %v432, %v509
        %511 = vmatmul.f32.gmra.mxu0 %v468
        %v512 = vpop.f32.mrf.mxu0
        %v513 = vadd.f32 %v437, %v512
        %514 = vmatmul.f32.gmra.mxu0 %v471
        %v515 = vpop.f32.mrf.mxu0
        %v516 = vadd.f32 %v442, %v515
        %517 = vmatmul.f32.gmra.mxu0 %v474
        %v518 = vpop.f32.mrf.mxu0
        %v519 = vadd.f32 %v447, %v518
        %520 = vmatmul.f32.gmra.mxu0 %v477
        %v521 = vpop.f32.mrf.mxu0
        %v522 = vadd.f32 %v452, %v521
        %523 = vdwg.mxu0
        %v524 = vtanh.pop %v501
        %v525 = vtanh.pop %v504
        %v526 = vtanh.pop %v507
        %v527 = vtanh.pop %v510
        %528 = vst [vmem:[#allocation2] sm:$0xff] %v524
        %529 = vst [vmem:[#allocation2 + $0x8] sm:$0xff] %v525
        %530 = vst [vmem:[#allocation2 + $0x10] sm:$0xff] %v526
        %531 = vst [vmem:[#allocation2 + $0x18] sm:$0xff] %v527
        %v532 = vmax.f32 %v513, 0.0
        %v533 = vmax.f32 %v516, 0.0
        %v534 = vmax.f32 %v519, 0.0
        %v535 = vmax.f32 %v522, 0.0
        %536 = vst [vmem:[#allocation2 + $0x20] sm:$0xff] %v532
        %537 = vst [vmem:[#allocation2 + $0x28] sm:$0xff] %v533
        %538 = vst [vmem:[#allocation2 + $0x30] sm:$0xff] %v534
        %539 = vst [vmem:[#allocation2 + $0x38] sm:$0xff] %v535
        %v540 = vld [vmem:[%s4] sm:$0xff]
        %v541 = vld [vmem:[%s4 + $0x8] sm:$0xff]
        %v542 = vld [vmem:[%s4 + $0x10] sm:$0xff]
        %v543 = vld [vmem:[%s4 + $0x18] sm:$0xff]
        %v544 = vld [vmem:[%s4 + $0x20] sm:$0xff]
        %v545 = vld [vmem:[%s4 + $0x28] sm:$0xff]
        %v546 = vld [vmem:[%s4 + $0x30] sm:$0xff]
        %v547 = vld [vmem:[%s4 + $0x38] sm:$0xff]
        %v548 = vld [vmem:[#allocation2] sm:$0xff]
        %v549 = vld [vmem:[#allocation2 + $0x8] sm:$0xff]
        %v550 = vld [vmem:[#allocation2 + $0x10] sm:$0xff]
        %v551 = vld [vmem:[#allocation2 + $0x18] sm:$0xff]
        %v552 = vld [vmem:[#allocation2 + $0x20] sm:$0xff]
        %v553 = vld [vmem:[#allocation2 + $0x28] sm:$0xff]
        %v554 = vld [vmem:[#allocation2 + $0x30] sm:$0xff]
        %v555 = vld [vmem:[#allocation2 + $0x38] sm:$0xff]
        %v556 = vld [vmem:[%s5] sm:$0xff]
        %v557 = vld [vmem:[%s5 + $0x8] sm:$0xff]
        %v558 = vld [vmem:[%s5 + $0x10] sm:$0xff]
        %v559 = vld [vmem:[%s5 + $0x18] sm:$0xff]
        %v560 = vld [vmem:[%s5 + $0x20] sm:$0xff]
        %v561 = vld [vmem:[%s5 + $0x28] sm:$0xff]
        %v562 = vld [vmem:[%s5 + $0x30] sm:$0xff]
        %v563 = vld [vmem:[%s5 + $0x38] sm:$0xff]
        %565 = vset.pattern.permute.xlu0 0
        %566 = vperm.xlu0 %565, %v556
        %v567 = vpop.permute.xlu0 %566
        %570 = vset.pattern.permute.xlu0 0
        %571 = vperm.xlu0 %570, %v557
        %v572 = vpop.permute.xlu0 %571
        %575 = vset.pattern.permute.xlu0 0
        %576 = vperm.xlu0 %575, %v558
        %v577 = vpop.permute.xlu0 %576
        %580 = vset.pattern.permute.xlu0 0
        %581 = vperm.xlu0 %580, %v559
        %v582 = vpop.permute.xlu0 %581
        %585 = vset.pattern.permute.xlu0 0
        %586 = vperm.xlu0 %585, %v560
        %v587 = vpop.permute.xlu0 %586
        %590 = vset.pattern.permute.xlu0 0
        %591 = vperm.xlu0 %590, %v561
        %v592 = vpop.permute.xlu0 %591
        %595 = vset.pattern.permute.xlu0 0
        %596 = vperm.xlu0 %595, %v562
        %v597 = vpop.permute.xlu0 %596
        %600 = vset.pattern.permute.xlu0 0
        %601 = vperm.xlu0 %600, %v563
        %v602 = vpop.permute.xlu0 %601
        %vm604 = vcmask 523264
        %v606 = vsel %vm604, %v540, 0
        %v609 = vsel %vm604, %v541, 0
        %v612 = vsel %vm604, %v542, 0
        %v615 = vsel %vm604, %v543, 0
        %v618 = vsel %vm604, %v544, 0
        %v621 = vsel %vm604, %v545, 0
        %v624 = vsel %vm604, %v546, 0
        %v627 = vsel %vm604, %v547, 0
        %629 = vmatpush.msra.mxu0 0.0
        %630 = vmatpush.msra.mxu0 0.0
        %631 = vmatpush.msra.mxu0 0.0
        %632 = vmatpush.msra.mxu0 0.0
        %633 = vmatpush.msra.mxu0 0.0
        %634 = vmatpush.msra.mxu0 0.0
        %635 = vmatpush.msra.mxu0 0.0
        %636 = vmatpush.msra.mxu0 0.0
        %637 = vmatpush.msra.mxu0 %v555
        %638 = vmatpush.msra.mxu0 %v554
        %639 = vmatpush.msra.mxu0 %v553
        %640 = vmatpush.msra.mxu0 %v552
        %641 = vmatpush.msra.mxu0 %v551
        %642 = vmatpush.msra.mxu0 %v550
        %643 = vmatpush.msra.mxu0 %v549
        %644 = vmatpush.msra.mxu0 %v548
        %645 = vmatmul.f32.gmra.mxu0 %v606
        %v646 = vpop.f32.mrf.mxu0
        %v647 = vadd.f32 %v567, %v646
        %648 = vmatmul.f32.gmra.mxu0 %v609
        %v649 = vpop.f32.mrf.mxu0
        %v650 = vadd.f32 %v572, %v649
        %651 = vmatmul.f32.gmra.mxu0 %v612
        %v652 = vpop.f32.mrf.mxu0
        %v653 = vadd.f32 %v577, %v652
        %654 = vmatmul.f32.gmra.mxu0 %v615
        %v655 = vpop.f32.mrf.mxu0
        %v656 = vadd.f32 %v582, %v655
        %657 = vmatmul.f32.gmra.mxu0 %v618
        %v658 = vpop.f32.mrf.mxu0
        %v659 = vadd.f32 %v587, %v658
        %660 = vmatmul.f32.gmra.mxu0 %v621
        %v661 = vpop.f32.mrf.mxu0
        %v662 = vadd.f32 %v592, %v661
        %663 = vmatmul.f32.gmra.mxu0 %v624
        %v664 = vpop.f32.mrf.mxu0
        %v665 = vadd.f32 %v597, %v664
        %666 = vmatmul.f32.gmra.mxu0 %v627
        %v667 = vpop.f32.mrf.mxu0
        %v668 = vadd.f32 %v602, %v667
        %669 = vdwg.mxu0
        %v670 = vtanh.pop %v647
        %v671 = vtanh.pop %v650
        %v672 = vtanh.pop %v653
        %v673 = vtanh.pop %v656
        %674 = vst [vmem:[#allocation2] sm:$0xff] %v670
        %675 = vst [vmem:[#allocation2 + $0x8] sm:$0xff] %v671
        %676 = vst [vmem:[#allocation2 + $0x10] sm:$0xff] %v672
        %677 = vst [vmem:[#allocation2 + $0x18] sm:$0xff] %v673
        %v678 = vmax.f32 %v659, 0.0
        %v679 = vmax.f32 %v662, 0.0
        %v680 = vmax.f32 %v665, 0.0
        %v681 = vmax.f32 %v668, 0.0
        %682 = vst [vmem:[#allocation2 + $0x20] sm:$0xff] %v678
        %683 = vst [vmem:[#allocation2 + $0x28] sm:$0xff] %v679
        %684 = vst [vmem:[#allocation2 + $0x30] sm:$0xff] %v680
        %685 = vst [vmem:[#allocation2 + $0x38] sm:$0xff] %v681
        %v686 = vld [vmem:[%s6] sm:$0xff]
        %v687 = vld [vmem:[%s6 + $0x8] sm:$0xff]
        %v688 = vld [vmem:[#allocation2] sm:$0xff]
        %v689 = vld [vmem:[#allocation2 + $0x8] sm:$0xff]
        %v690 = vld [vmem:[#allocation2 + $0x10] sm:$0xff]
        %v691 = vld [vmem:[#allocation2 + $0x18] sm:$0xff]
        %v692 = vld [vmem:[#allocation2 + $0x20] sm:$0xff]
        %v693 = vld [vmem:[#allocation2 + $0x28] sm:$0xff]
        %v694 = vld [vmem:[#allocation2 + $0x30] sm:$0xff]
        %v695 = vld [vmem:[#allocation2 + $0x38] sm:$0xff]
        %v696 = vld [vmem:[%s7] sm:$0xff]
        %v697 = vld [vmem:[%s7 + $0x8] sm:$0xff]
        %699 = vset.pattern.permute.xlu0 0
        %700 = vperm.xlu0 %699, %v696
        %v701 = vpop.permute.xlu0 %700
        %704 = vset.pattern.permute.xlu0 0
        %705 = vperm.xlu0 %704, %v697
        %v706 = vpop.permute.xlu0 %705
        %v709 = vsel %vm604, %v686, 0
        %v712 = vsel %vm604, %v687, 0
        %714 = vmatpush.msra.mxu0 0.0
        %715 = vmatpush.msra.mxu0 0.0
        %716 = vmatpush.msra.mxu0 0.0
        %717 = vmatpush.msra.mxu0 0.0
        %718 = vmatpush.msra.mxu0 0.0
        %719 = vmatpush.msra.mxu0 0.0
        %720 = vmatpush.msra.mxu0 0.0
        %721 = vmatpush.msra.mxu0 0.0
        %722 = vmatpush.msra.mxu0 %v695
        %723 = vmatpush.msra.mxu0 %v694
        %724 = vmatpush.msra.mxu0 %v693
        %725 = vmatpush.msra.mxu0 %v692
        %726 = vmatpush.msra.mxu0 %v691
        %727 = vmatpush.msra.mxu0 %v690
        %728 = vmatpush.msra.mxu0 %v689
        %729 = vmatpush.msra.mxu0 %v688
        %730 = vmatmul.f32.gmra.mxu0 %v709
        %v731 = vpop.f32.mrf.mxu0
        %v732 = vadd.f32 %v701, %v731
        %733 = vmatmul.f32.gmra.mxu0 %v712
        %v734 = vpop.f32.mrf.mxu0
        %v735 = vadd.f32 %v706, %v734
        %736 = vdwg.mxu0
        %738 = vset.pattern.permute.xlu0 0
        %739 = vperm.xlu0 %738, %v385
        %v740 = vpop.permute.xlu0 %739
        %v742 = vmul.f32 %v735, %v740
        %v743 = vtanh.pop %v732
        %v744 = vmul.f32 %v743, %v740
        %v745 = vmul.f32 %v744, 1.442695
        %v746 = vpow.pop %v745
        %v747 = vmul.f32 %v381, %v746
        %v748 = vadd.f32 %v747, %v742
        %749 = vst [vmem:[%s373] sm:$0xff] %v748
        %750 = vst [vmem:[%s380] sm:$0xff] %v744
        %s751 = sand.u32 %s208, 1
        %s752 = scalar_lea.sflag [#allocation5], %s751
        %s753 = sand.u32 %s208, 1
        %s754 = smul.addr %s753, 8
        %s755 = scalar_lea.vmem [#allocation4], %s754
        %s756 = sand.u32 %s234, 1
        %s757 = scalar_lea.sflag [#allocation7], %s756
        %s758 = sand.u32 %s234, 1
        %s759 = smul.addr %s758, 8
        %s760 = scalar_lea.vmem [#allocation6], %s759
        // Predicated region
        $region91: #{tpu_custom_call.1} parent=85 // pred_check
          %p761 = pneg %p218
        $region92: #{tpu_custom_call.1} parent=85 // pred_check_branch
          %763 = sbr.rel (%p761) target = $region94
        $region93: #{tpu_custom_call.1} parent=85 // pred_region
          %765 = vsyncadd %s752, 0
          %s766 = smul.addr %s27, 8
          %s767 = scalar_lea.hbm %s8, %s766
          %s769 = sshll.u32 %s755, 4
          %s770 = int_to_ptr.vmem [resolvable:$true] %s769
          %s771 = sshll.u32 %s767, 4
          %s772 = int_to_ptr.hbm [resolvable:$true] %s771
          %774 = dma.vmem_to_hbm [thread:$0]  %s770, 128, %s772, %s752
        $region94: #{tpu_custom_call.1} parent=85 // pred_fallthru
          _
        // Predicated region
        $region95: #{tpu_custom_call.1} parent=85 // pred_check
          %p775 = pneg %p244
        $region96: #{tpu_custom_call.1} parent=85 // pred_check_branch
          %777 = sbr.rel (%p775) target = $region98
        $region97: #{tpu_custom_call.1} parent=85 // pred_region
          %779 = vsyncadd %s757, 0
          %s780 = smul.addr %s27, 8
          %s781 = scalar_lea.hbm %s9, %s780
          %s783 = sshll.u32 %s760, 4
          %s784 = int_to_ptr.vmem [resolvable:$true] %s783
          %s785 = sshll.u32 %s781, 4
          %s786 = int_to_ptr.hbm [resolvable:$true] %s785
          %788 = dma.vmem_to_hbm [thread:$0]  %s784, 128, %s786, %s757
        $region98: #{tpu_custom_call.1} parent=85 // pred_fallthru
          _
      $region86: #{tpu_custom_call.1} parent=5 // pred_fallthru
        _
      %p789 = scmp.le.s32.totalorder 2, %s22
      // Predicated region
      $region99: #{tpu_custom_call.1} parent=5 // pred_check
        %p790 = pneg %p789
      $region100: #{tpu_custom_call.1} parent=5 // pred_check_branch
        %792 = sbr.rel (%p790) target = $region102
      $region101: #{tpu_custom_call.1} parent=5 // pred_region
        %s793 = ssub.s32 %s22, 2
        // Predicated region
        $region103: #{tpu_custom_call.1} parent=101 // pred_check
          %p794 = pneg %p224
        $region104: #{tpu_custom_call.1} parent=101 // pred_check_branch
          %796 = sbr.rel (%p794) target = $region106
        $region105: #{tpu_custom_call.1} parent=101 // pred_region
          %s797 = sand.u32 %s209, 1
          %s798 = scalar_lea.sflag [#allocation5], %s797
          %s799 = sand.u32 %s209, 1
          %s800 = smul.addr %s799, 8
          %s801 = scalar_lea.vmem [#allocation4], %s800
          %803 = dma.done %s798, 128
        $region106: #{tpu_custom_call.1} parent=101 // pred_fallthru
          _
        // Predicated region
        $region107: #{tpu_custom_call.1} parent=101 // pred_check
          %p804 = pneg %p250
        $region108: #{tpu_custom_call.1} parent=101 // pred_check_branch
          %806 = sbr.rel (%p804) target = $region110
        $region109: #{tpu_custom_call.1} parent=101 // pred_region
          %s807 = sand.u32 %s235, 1
          %s808 = scalar_lea.sflag [#allocation7], %s807
          %s809 = sand.u32 %s235, 1
          %s810 = smul.addr %s809, 8
          %s811 = scalar_lea.vmem [#allocation6], %s810
          %813 = dma.done %s808, 128
        $region110: #{tpu_custom_call.1} parent=101 // pred_fallthru
          _
      $region102: #{tpu_custom_call.1} parent=5 // pred_fallthru
        _
    $region6: #{tpu_custom_call.1} parent=1 // loop_footer
      %s26 = sadd.s32 1, %s22
    $region7: #{tpu_custom_call.1} parent=1 // loop_footer_branch
      %21 = sbr.rel target = $region3
    $region8: #{tpu_custom_call.1} parent=1 // loop_exit
      _
    %814 = vsyncpa [#allocation5], 1
    %s815 = scalar_lea.sflag [#allocation5], 1
    %816 = vsyncpa %s815, 1
    %817 = vsyncpa [#allocation7], 1
    %s818 = scalar_lea.sflag [#allocation7], 1
    %819 = vsyncpa %s818, 1

</llo_original>
